<compile_context>
chip_gen: v7x
topology: tpu7x:2x2x1
jax: 0.10.0
libtpu: 0.0.40
codegen_flags: <defaults>
</compile_context>

<pallas_src>
import functools

import jax
import jax.numpy as jnp
from jax.experimental import pallas as pl
from jax.experimental.pallas import tpu as pltpu


_LANE = 128     # lane width: last dim of every tile
_SUBLANE = 8    # f32 sublane quantum: second-to-last dim of every tile


def _round_up(x, m):
    return ((x + m - 1) // m) * m


def _mlp_kernel(x_ref, w1_ref, b1_ref, w2_ref, b2_ref, w3_ref, b3_ref,
                o_ref, *, slope, mxu_dtype):
    """Fused 3-layer MLP: (Linear + LeakyReLU) x 2 -> Linear -> Tanh."""

    def dense(a, w_ref, b_ref):
        # MXU matmul; operands already in the MXU dtype, accumulate in f32.
        y = jnp.dot(a, w_ref[...], preferred_element_type=jnp.float32)
        return y + b_ref[...].astype(jnp.float32)        # bias add in f32 (VPU)

    def leaky(h):
        # LeakyReLU for 0 < slope < 1: a single vmax per element.
        return jnp.maximum(h, slope * h)

    def to_mxu(h):
        return h if mxu_dtype is None else h.astype(mxu_dtype)

    # x_ref is already stored in the MXU operand dtype (bf16 or f32):
    # no f32 round-trip for layer 1.
    h = dense(x_ref[...], w1_ref, b1_ref)
    h = leaky(h)
    h = dense(to_mxu(h), w2_ref, b2_ref)
    h = leaky(h)
    h = dense(to_mxu(h), w3_ref, b3_ref)
    o_ref[...] = jnp.tanh(h).astype(o_ref.dtype)         # Tanh on EUP, f32


def _tpu_generation_info():
    """Returns (is_v7x, physical_vmem_bytes) for the default device."""
    try:
        kind = jax.devices()[0].device_kind.lower()
    except Exception:
        kind = ""
    is_v7 = "v7" in kind
    phys_vmem = (64 << 20) if is_v7 else (128 << 20)
    try:
        phys_vmem = int(pltpu.get_tpu_info().vmem_capacity_bytes)
    except Exception:
        pass
    return is_v7, phys_vmem


def dcgan_g_forward(x, params, *, slope, batch_tile=None,
                    mxu_dtype=jnp.bfloat16):
    """Forward pass of DCGAN_G as a single fused Pallas kernel.

    x: (B, z_size) float32.
    params: dict with w1 (z,h1), b1 (1,h1), w2 (h1,h2), b2 (1,h2),
            w3 (h2,x_size), b3 (1,x_size).  Weights are pre-transposed to
            (in, out) so the kernel computes y = x @ W + b on the MXU.
    mxu_dtype: matmul-operand dtype.  bf16 by default on EVERY TPU generation
        (the v5e MXU takes bf16 operands too); pass None for full-f32
        operands.  Accumulation and all elementwise math stay f32 either way.
    """
    B, z = x.shape
    h1 = params["w1"].shape[1]
    h2 = params["w2"].shape[1]
    xo = params["w3"].shape[1]

    # ---- lane-dense padding of every feature dim (zero-pad, slice later) ----
    zp, h1p, h2p, xop = (_round_up(d, _LANE) for d in (z, h1, h2, xo))

    mxu_itemsize = 4 if mxu_dtype is None else jnp.dtype(mxu_dtype).itemsize

    # ---- generation-aware VMEM budget ---------------------------------------
    is_v7, phys_vmem = _tpu_generation_info()
    # ~48 MiB cap on v7x (64 MiB physical), ~100 MiB on v5e/v6e (128 MiB).
    vmem_cap = min(phys_vmem - (16 << 20),
                   (48 << 20) if is_v7 else (100 << 20))

    # Single-buffered resident weights (biases stay f32).
    weight_bytes = (mxu_itemsize * (zp * h1p + h1p * h2p + h2p * xop)
                    + 4 * (h1p + h2p + xop))
    # Per-row footprint: double-buffered x/out tiles + f32 activations for all
    # three layers + their MXU-dtype casts (generous: treated as live at once).
    per_row_bytes = (2 * (mxu_itemsize * zp + 4 * xop)
                     + 4 * (h1p + h2p + xop)
                     + mxu_itemsize * (h1p + h2p))
    act_budget = vmem_cap - weight_bytes - (8 << 20)      # 8 MiB headroom
    budget_rows = int(act_budget // per_row_bytes) if act_budget > 0 else 0
    max_tile = max(_SUBLANE, (min(1024, budget_rows) // _SUBLANE) * _SUBLANE)

    # ---- batch tiling: minimal padding, generation-aware step count ---------
    b8 = _round_up(B, _SUBLANE)
    if batch_tile is None:
        if is_v7:
            # 2 TensorCores: even step count (>=4 if the batch allows) so the
            # "parallel" batch axis shards evenly across both cores.
            min_steps = 4 if b8 >= 4 * _SUBLANE else 2
            n_steps = _round_up(max(min_steps, pl.cdiv(b8, max_tile)), 2)
        else:
            # Single TC (v5e/v6e): extra grid steps are serial overhead; use
            # one big tile whenever it fits the VMEM budget.
            n_steps = pl.cdiv(b8, max_tile)
        batch_tile = _round_up(pl.cdiv(B, n_steps), _SUBLANE)
    else:
        batch_tile = max(_SUBLANE, _round_up(int(batch_tile), _SUBLANE))
        n_steps = pl.cdiv(B, batch_tile)
    Bp = n_steps * batch_tile
    grid = (n_steps,)

    # ---- zero-pad operands (padding preserves semantics; sliced back) -------
    def pad2(a, rows, cols, dtype=None):
        a = jnp.pad(a, ((0, rows - a.shape[0]), (0, cols - a.shape[1])))
        return a if dtype is None else a.astype(dtype)

    x_p = pad2(x, Bp, zp, mxu_dtype)                 # input DMA in MXU dtype
    w1 = pad2(params["w1"], zp, h1p, mxu_dtype)
    w2 = pad2(params["w2"], h1p, h2p, mxu_dtype)
    w3 = pad2(params["w3"], h2p, xop, mxu_dtype)
    b1 = pad2(params["b1"], 1, h1p)
    b2 = pad2(params["b2"], 1, h2p)
    b3 = pad2(params["b3"], 1, xop)

    nbytes = lambda a: int(a.size) * a.dtype.itemsize
    real_weight_bytes = sum(nbytes(a) for a in (w1, b1, w2, b2, w3, b3))
    io_bytes = 2 * batch_tile * (mxu_itemsize * zp + 4 * xop)
    interm_bytes = batch_tile * (4 * (h1p + h2p + xop)
                                 + mxu_itemsize * (h1p + h2p))

    cost = pl.CostEstimate(
        flops=2 * Bp * (zp * h1p + h1p * h2p + h2p * xop),
        transcendentals=Bp * xop,
        bytes_accessed=nbytes(x_p) + real_weight_bytes + Bp * xop * 4,
    )

    kernel = functools.partial(_mlp_kernel, slope=slope, mxu_dtype=mxu_dtype)

    def run(single_buffer_weights):
        # Constant index_map keeps weights/biases VMEM-resident across the
        # batch grid; Buffered(1) single-buffers them (nothing to pipeline),
        # halving their VMEM footprint vs the default double-buffering.
        if single_buffer_weights:
            resident = lambda shape: pl.BlockSpec(
                shape, lambda i: (0, 0), pipeline_mode=pl.Buffered(1))
            weight_mult = 1
        else:
            resident = lambda shape: pl.BlockSpec(shape, lambda i: (0, 0))
            weight_mult = 2
        vmem_limit = (weight_mult * real_weight_bytes + io_bytes
                      + interm_bytes + (8 << 20))
        vmem_limit = int(max(16 << 20, min(vmem_limit, vmem_cap)))
        return pl.pallas_call(
            kernel,
            out_shape=jax.ShapeDtypeStruct((Bp, xop), x.dtype),
            grid_spec=pltpu.PrefetchScalarGridSpec(
                num_scalar_prefetch=0,
                grid=grid,
                in_specs=[
                    pl.BlockSpec((batch_tile, zp), lambda i: (i, 0)),
                    resident((zp, h1p)), resident((1, h1p)),
                    resident((h1p, h2p)), resident((1, h2p)),
                    resident((h2p, xop)), resident((1, xop)),
                ],
                out_specs=pl.BlockSpec((batch_tile, xop), lambda i: (i, 0)),
            ),
            compiler_params=pltpu.CompilerParams(
                # NOTE: batch-parallel megacore replicates the (small) weight
                # DMA on both v7x cores; for a weight-DMA-bound regime shard
                # the output-feature axis across cores instead.
                dimension_semantics=("parallel",),
                vmem_limit_bytes=vmem_limit,
            ),
            cost_estimate=cost,
        )(x_p, w1, b1, w2, b2, w3, b3)

    try:
        out_padded = run(single_buffer_weights=True)
    except Exception:
        # Fallback if the deployed Mosaic rejects buffer_count=1 pipelining;
        # identical semantics, just default double-buffered weights.
        out_padded = run(single_buffer_weights=False)

    return out_padded[:B, :xo]


def _init_params(key, z_size, h1, h2, x_size):
    """Deterministic synthetic parameters (PyTorch Linear-like uniform init)."""
    ks = jax.random.split(key, 6)

    def lin(kw, kb, fan_in, fan_out):
        bound = 1.0 / jnp.sqrt(fan_in)
        # Stored pre-transposed: (in, out), vs PyTorch's (out, in).
        w = jax.random.uniform(kw, (fan_in, fan_out), jnp.float32, -bound, bound)
        b = jax.random.uniform(kb, (1, fan_out), jnp.float32, -bound, bound)
        return w, b

    w1, b1 = lin(ks[0], ks[1], z_size, h1)
    w2, b2 = lin(ks[2], ks[3], h1, h2)
    w3, b3 = lin(ks[4], ks[5], h2, x_size)
    return dict(w1=w1, b1=b1, w2=w2, b2=b2, w3=w3, b3=b3)


def _reference(x, p, slope):
    h = x @ p["w1"] + p["b1"]
    h = jnp.where(h > 0, h, slope * h)
    h = h @ p["w2"] + p["b2"]
    h = jnp.where(h > 0, h, slope * h)
    h = h @ p["w3"] + p["b3"]
    return jnp.tanh(h)


if __name__ == "__main__":
    # Config consistent with the module constructor:
    #   z_size=16, G_h1_size=32, G_h2_size=32, x_size=64, LeakyReLU_slope=0.2
    z_size, h1, h2, x_size = 16, 32, 32, 64
    slope = 0.2
    batch = 32

    key = jax.random.PRNGKey(0)
    k_x, k_p = jax.random.split(key)
    x = jax.random.normal(k_x, (batch, z_size), jnp.float32)
    params = _init_params(k_p, z_size, h1, h2, x_size)

    ref = _reference(x, params, slope)

    # Full-f32 MXU operands (tight numerical check), auto tiling policy.
    out = dcgan_g_forward(x, params, slope=slope, mxu_dtype=None)
    out = jax.block_until_ready(out)
    assert out.shape == (batch, x_size), out.shape
    err = float(jnp.max(jnp.abs(out - ref)))
    assert jnp.allclose(out, ref, atol=1e-5, rtol=1e-5), err

    # Default path: bf16 MXU operands on every generation (incl. v5e), f32
    # accumulation / activations; looser tolerance.
    out_bf16 = dcgan_g_forward(x, params, slope=slope)
    out_bf16 = jax.block_until_ready(out_bf16)
    err_bf16 = float(jnp.max(jnp.abs(out_bf16 - ref)))
    assert jnp.allclose(out_bf16, ref, atol=5e-2, rtol=5e-2), err_bf16

    print("KERNEL_OK")
</pallas_src>

<mosaic_0001>
module attributes {stable_mosaic.version = 11 : i64} {
  func.func @_mlp_kernel(%arg0: i32, %arg1: memref<32x128xf32, #tpu.memory_space<vmem>>, %arg2: memref<128x128xf32, #tpu.memory_space<vmem>>, %arg3: memref<1x128xf32, #tpu.memory_space<vmem>>, %arg4: memref<128x128xf32, #tpu.memory_space<vmem>>, %arg5: memref<1x128xf32, #tpu.memory_space<vmem>>, %arg6: memref<128x128xf32, #tpu.memory_space<vmem>>, %arg7: memref<1x128xf32, #tpu.memory_space<vmem>>, %arg8: memref<32x128xf32, #tpu.memory_space<vmem>>) attributes {dimension_semantics = [#tpu.dimension_semantics<parallel>], iteration_bounds = array<i64: 1>, scalar_prefetch = 0 : i64, scratch_operands = 0 : i64, tpu.core_type = #tpu.core_type<tc>, window_params = [{transform_indices = @transform_0, window_bounds = array<i64: 32, 128>}, {pipeline_mode = #tpu.pipeline_mode<synchronous>, transform_indices = @transform_1, window_bounds = array<i64: 128, 128>}, {pipeline_mode = #tpu.pipeline_mode<synchronous>, transform_indices = @transform_2, window_bounds = array<i64: 1, 128>}, {pipeline_mode = #tpu.pipeline_mode<synchronous>, transform_indices = @transform_3, window_bounds = array<i64: 128, 128>}, {pipeline_mode = #tpu.pipeline_mode<synchronous>, transform_indices = @transform_4, window_bounds = array<i64: 1, 128>}, {pipeline_mode = #tpu.pipeline_mode<synchronous>, transform_indices = @transform_5, window_bounds = array<i64: 128, 128>}, {pipeline_mode = #tpu.pipeline_mode<synchronous>, transform_indices = @transform_6, window_bounds = array<i64: 1, 128>}, {transform_indices = @transform_7, window_bounds = array<i64: 32, 128>}]} {
    %c0 = arith.constant 0 : index
    %c0_0 = arith.constant 0 : index
    %0 = vector.load %arg1[%c0, %c0_0] : memref<32x128xf32, #tpu.memory_space<vmem>>, vector<32x128xf32>
    %c0_1 = arith.constant 0 : index
    %c0_2 = arith.constant 0 : index
    %1 = vector.load %arg2[%c0_1, %c0_2] : memref<128x128xf32, #tpu.memory_space<vmem>>, vector<128x128xf32>
    %cst = arith.constant dense<0.000000e+00> : vector<32x128xf32>
    %2 = tpu.matmul %0, %1, %cst {dimension_numbers = #tpu.dot_dimension_numbers<[1], [0], [0], [1], [0, 0, 1, 1], [], []>} : vector<32x128xf32>, vector<128x128xf32>, vector<32x128xf32> -> vector<32x128xf32>
    %c0_3 = arith.constant 0 : index
    %c0_4 = arith.constant 0 : index
    %3 = vector.load %arg3[%c0_3, %c0_4] : memref<1x128xf32, #tpu.memory_space<vmem>>, vector<1x128xf32>
    %4 = vector.broadcast %3 : vector<1x128xf32> to vector<32x128xf32>
    %5 = arith.addf %2, %4 : vector<32x128xf32>
    %cst_5 = arith.constant 2.000000e-01 : f32
    %6 = vector.broadcast %cst_5 : f32 to vector<32x128xf32>
    %7 = arith.mulf %6, %5 : vector<32x128xf32>
    %8 = arith.maximumf %5, %7 : vector<32x128xf32>
    %c0_6 = arith.constant 0 : index
    %c0_7 = arith.constant 0 : index
    %9 = vector.load %arg4[%c0_6, %c0_7] : memref<128x128xf32, #tpu.memory_space<vmem>>, vector<128x128xf32>
    %cst_8 = arith.constant dense<0.000000e+00> : vector<32x128xf32>
    %10 = tpu.matmul %8, %9, %cst_8 {dimension_numbers = #tpu.dot_dimension_numbers<[1], [0], [0], [1], [0, 0, 1, 1], [], []>} : vector<32x128xf32>, vector<128x128xf32>, vector<32x128xf32> -> vector<32x128xf32>
    %c0_9 = arith.constant 0 : index
    %c0_10 = arith.constant 0 : index
    %11 = vector.load %arg5[%c0_9, %c0_10] : memref<1x128xf32, #tpu.memory_space<vmem>>, vector<1x128xf32>
    %12 = vector.broadcast %11 : vector<1x128xf32> to vector<32x128xf32>
    %13 = arith.addf %10, %12 : vector<32x128xf32>
    %cst_11 = arith.constant 2.000000e-01 : f32
    %14 = vector.broadcast %cst_11 : f32 to vector<32x128xf32>
    %15 = arith.mulf %14, %13 : vector<32x128xf32>
    %16 = arith.maximumf %13, %15 : vector<32x128xf32>
    %c0_12 = arith.constant 0 : index
    %c0_13 = arith.constant 0 : index
    %17 = vector.load %arg6[%c0_12, %c0_13] : memref<128x128xf32, #tpu.memory_space<vmem>>, vector<128x128xf32>
    %cst_14 = arith.constant dense<0.000000e+00> : vector<32x128xf32>
    %18 = tpu.matmul %16, %17, %cst_14 {dimension_numbers = #tpu.dot_dimension_numbers<[1], [0], [0], [1], [0, 0, 1, 1], [], []>} : vector<32x128xf32>, vector<128x128xf32>, vector<32x128xf32> -> vector<32x128xf32>
    %c0_15 = arith.constant 0 : index
    %c0_16 = arith.constant 0 : index
    %19 = vector.load %arg7[%c0_15, %c0_16] : memref<1x128xf32, #tpu.memory_space<vmem>>, vector<1x128xf32>
    %20 = vector.broadcast %19 : vector<1x128xf32> to vector<32x128xf32>
    %21 = arith.addf %18, %20 : vector<32x128xf32>
    %22 = math.tanh %21 : vector<32x128xf32>
    %c0_17 = arith.constant 0 : index
    %c0_18 = arith.constant 0 : index
    %23 = vector.load %arg8[%c0_17, %c0_18] : memref<32x128xf32, #tpu.memory_space<vmem>>, vector<32x128xf32>
    tpu.vector_store %arg8[%c0_17, %c0_18], %22 {strides = array<i32>} : memref<32x128xf32, #tpu.memory_space<vmem>>, vector<32x128xf32>,
    return
  }
  func.func @transform_0(%arg0: i32) -> (i32, i32) {
    %c0_i32 = arith.constant 0 : i32
    %c0_i32_0 = arith.constant 0 : i32
    return %arg0, %c0_i32 : i32, i32
  }
  func.func @transform_1(%arg0: i32) -> (i32, i32) {
    %c0_i32 = arith.constant 0 : i32
    %c0_i32_0 = arith.constant 0 : i32
    %c0_i32_1 = arith.constant 0 : i32
    return %c0_i32, %c0_i32_0 : i32, i32
  }
  func.func @transform_2(%arg0: i32) -> (i32, i32) {
    %c0_i32 = arith.constant 0 : i32
    %c0_i32_0 = arith.constant 0 : i32
    %c0_i32_1 = arith.constant 0 : i32
    return %c0_i32, %c0_i32_0 : i32, i32
  }
  func.func @transform_3(%arg0: i32) -> (i32, i32) {
    %c0_i32 = arith.constant 0 : i32
    %c0_i32_0 = arith.constant 0 : i32
    %c0_i32_1 = arith.constant 0 : i32
    return %c0_i32, %c0_i32_0 : i32, i32
  }
  func.func @transform_4(%arg0: i32) -> (i32, i32) {
    %c0_i32 = arith.constant 0 : i32
    %c0_i32_0 = arith.constant 0 : i32
    %c0_i32_1 = arith.constant 0 : i32
    return %c0_i32, %c0_i32_0 : i32, i32
  }
  func.func @transform_5(%arg0: i32) -> (i32, i32) {
    %c0_i32 = arith.constant 0 : i32
    %c0_i32_0 = arith.constant 0 : i32
    %c0_i32_1 = arith.constant 0 : i32
    return %c0_i32, %c0_i32_0 : i32, i32
  }
  func.func @transform_6(%arg0: i32) -> (i32, i32) {
    %c0_i32 = arith.constant 0 : i32
    %c0_i32_0 = arith.constant 0 : i32
    %c0_i32_1 = arith.constant 0 : i32
    return %c0_i32, %c0_i32_0 : i32, i32
  }
  func.func @transform_7(%arg0: i32) -> (i32, i32) {
    %c0_i32 = arith.constant 0 : i32
    %c0_i32_0 = arith.constant 0 : i32
    return %arg0, %c0_i32 : i32, i32
  }
}

module attributes {stable_mosaic.version = 11 : i64} {
  func.func @_mlp_kernel(%arg0: i32, %arg1: memref<32x128xf32, #tpu.memory_space<vmem>>, %arg2: memref<128x128xf32, #tpu.memory_space<vmem>>, %arg3: memref<1x128xf32, #tpu.memory_space<vmem>>, %arg4: memref<128x128xf32, #tpu.memory_space<vmem>>, %arg5: memref<1x128xf32, #tpu.memory_space<vmem>>, %arg6: memref<128x128xf32, #tpu.memory_space<vmem>>, %arg7: memref<1x128xf32, #tpu.memory_space<vmem>>, %arg8: memref<32x128xf32, #tpu.memory_space<vmem>>) attributes {dimension_semantics = [#tpu.dimension_semantics<parallel>], iteration_bounds = array<i64: 1>, scalar_prefetch = 0 : i64, scratch_operands = 0 : i64, tpu.core_type = #tpu.core_type<tc>, window_params = [{transform_indices = @transform_0, window_bounds = array<i64: 32, 128>}, {pipeline_mode = #tpu.pipeline_mode<synchronous>, transform_indices = @transform_1, window_bounds = array<i64: 128, 128>}, {pipeline_mode = #tpu.pipeline_mode<synchronous>, transform_indices = @transform_2, window_bounds = array<i64: 1, 128>}, {pipeline_mode = #tpu.pipeline_mode<synchronous>, transform_indices = @transform_3, window_bounds = array<i64: 128, 128>}, {pipeline_mode = #tpu.pipeline_mode<synchronous>, transform_indices = @transform_4, window_bounds = array<i64: 1, 128>}, {pipeline_mode = #tpu.pipeline_mode<synchronous>, transform_indices = @transform_5, window_bounds = array<i64: 128, 128>}, {pipeline_mode = #tpu.pipeline_mode<synchronous>, transform_indices = @transform_6, window_bounds = array<i64: 1, 128>}, {transform_indices = @transform_7, window_bounds = array<i64: 32, 128>}]} {
    %c0 = arith.constant 0 : index
    %c0_0 = arith.constant 0 : index
    %0 = vector.load %arg1[%c0, %c0_0] : memref<32x128xf32, #tpu.memory_space<vmem>>, vector<32x128xf32>
    %c0_1 = arith.constant 0 : index
    %c0_2 = arith.constant 0 : index
    %1 = vector.load %arg2[%c0_1, %c0_2] : memref<128x128xf32, #tpu.memory_space<vmem>>, vector<128x128xf32>
    %cst = arith.constant dense<0.000000e+00> : vector<32x128xf32>
    %2 = tpu.matmul %0, %1, %cst {dimension_numbers = #tpu.dot_dimension_numbers<[1], [0], [0], [1], [0, 0, 1, 1], [], []>} : vector<32x128xf32>, vector<128x128xf32>, vector<32x128xf32> -> vector<32x128xf32>
    %c0_3 = arith.constant 0 : index
    %c0_4 = arith.constant 0 : index
    %3 = vector.load %arg3[%c0_3, %c0_4] : memref<1x128xf32, #tpu.memory_space<vmem>>, vector<1x128xf32>
    %4 = vector.broadcast %3 : vector<1x128xf32> to vector<32x128xf32>
    %5 = arith.addf %2, %4 : vector<32x128xf32>
    %cst_5 = arith.constant 2.000000e-01 : f32
    %6 = vector.broadcast %cst_5 : f32 to vector<32x128xf32>
    %7 = arith.mulf %6, %5 : vector<32x128xf32>
    %8 = arith.maximumf %5, %7 : vector<32x128xf32>
    %c0_6 = arith.constant 0 : index
    %c0_7 = arith.constant 0 : index
    %9 = vector.load %arg4[%c0_6, %c0_7] : memref<128x128xf32, #tpu.memory_space<vmem>>, vector<128x128xf32>
    %cst_8 = arith.constant dense<0.000000e+00> : vector<32x128xf32>
    %10 = tpu.matmul %8, %9, %cst_8 {dimension_numbers = #tpu.dot_dimension_numbers<[1], [0], [0], [1], [0, 0, 1, 1], [], []>} : vector<32x128xf32>, vector<128x128xf32>, vector<32x128xf32> -> vector<32x128xf32>
    %c0_9 = arith.constant 0 : index
    %c0_10 = arith.constant 0 : index
    %11 = vector.load %arg5[%c0_9, %c0_10] : memref<1x128xf32, #tpu.memory_space<vmem>>, vector<1x128xf32>
    %12 = vector.broadcast %11 : vector<1x128xf32> to vector<32x128xf32>
    %13 = arith.addf %10, %12 : vector<32x128xf32>
    %cst_11 = arith.constant 2.000000e-01 : f32
    %14 = vector.broadcast %cst_11 : f32 to vector<32x128xf32>
    %15 = arith.mulf %14, %13 : vector<32x128xf32>
    %16 = arith.maximumf %13, %15 : vector<32x128xf32>
    %c0_12 = arith.constant 0 : index
    %c0_13 = arith.constant 0 : index
    %17 = vector.load %arg6[%c0_12, %c0_13] : memref<128x128xf32, #tpu.memory_space<vmem>>, vector<128x128xf32>
    %cst_14 = arith.constant dense<0.000000e+00> : vector<32x128xf32>
    %18 = tpu.matmul %16, %17, %cst_14 {dimension_numbers = #tpu.dot_dimension_numbers<[1], [0], [0], [1], [0, 0, 1, 1], [], []>} : vector<32x128xf32>, vector<128x128xf32>, vector<32x128xf32> -> vector<32x128xf32>
    %c0_15 = arith.constant 0 : index
    %c0_16 = arith.constant 0 : index
    %19 = vector.load %arg7[%c0_15, %c0_16] : memref<1x128xf32, #tpu.memory_space<vmem>>, vector<1x128xf32>
    %20 = vector.broadcast %19 : vector<1x128xf32> to vector<32x128xf32>
    %21 = arith.addf %18, %20 : vector<32x128xf32>
    %22 = math.tanh %21 : vector<32x128xf32>
    %c0_17 = arith.constant 0 : index
    %c0_18 = arith.constant 0 : index
    %23 = vector.load %arg8[%c0_17, %c0_18] : memref<32x128xf32, #tpu.memory_space<vmem>>, vector<32x128xf32>
    tpu.vector_store %arg8[%c0_17, %c0_18], %22 {strides = array<i32>} : memref<32x128xf32, #tpu.memory_space<vmem>>, vector<32x128xf32>,
    return
  }
  func.func @transform_0(%arg0: i32) -> (i32, i32) {
    %c0_i32 = arith.constant 0 : i32
    %c0_i32_0 = arith.constant 0 : i32
    return %arg0, %c0_i32 : i32, i32
  }
  func.func @transform_1(%arg0: i32) -> (i32, i32) {
    %c0_i32 = arith.constant 0 : i32
    %c0_i32_0 = arith.constant 0 : i32
    %c0_i32_1 = arith.constant 0 : i32
    return %c0_i32, %c0_i32_0 : i32, i32
  }
  func.func @transform_2(%arg0: i32) -> (i32, i32) {
    %c0_i32 = arith.constant 0 : i32
    %c0_i32_0 = arith.constant 0 : i32
    %c0_i32_1 = arith.constant 0 : i32
    return %c0_i32, %c0_i32_0 : i32, i32
  }
  func.func @transform_3(%arg0: i32) -> (i32, i32) {
    %c0_i32 = arith.constant 0 : i32
    %c0_i32_0 = arith.constant 0 : i32
    %c0_i32_1 = arith.constant 0 : i32
    return %c0_i32, %c0_i32_0 : i32, i32
  }
  func.func @transform_4(%arg0: i32) -> (i32, i32) {
    %c0_i32 = arith.constant 0 : i32
    %c0_i32_0 = arith.constant 0 : i32
    %c0_i32_1 = arith.constant 0 : i32
    return %c0_i32, %c0_i32_0 : i32, i32
  }
  func.func @transform_5(%arg0: i32) -> (i32, i32) {
    %c0_i32 = arith.constant 0 : i32
    %c0_i32_0 = arith.constant 0 : i32
    %c0_i32_1 = arith.constant 0 : i32
    return %c0_i32, %c0_i32_0 : i32, i32
  }
  func.func @transform_6(%arg0: i32) -> (i32, i32) {
    %c0_i32 = arith.constant 0 : i32
    %c0_i32_0 = arith.constant 0 : i32
    %c0_i32_1 = arith.constant 0 : i32
    return %c0_i32, %c0_i32_0 : i32, i32
  }
  func.func @transform_7(%arg0: i32) -> (i32, i32) {
    %c0_i32 = arith.constant 0 : i32
    %c0_i32_0 = arith.constant 0 : i32
    return %arg0, %c0_i32 : i32, i32
  }
}

</mosaic_0001>

<llo_original>
// kernel: tpu_custom_call.1
$region0: #{tpu_custom_call.1}
  #allocation0 [shape = 'u32[]', space=smem, size = 0x4, offset = 0x4, fixed_abs, tag = 'smem constant byte address 0x4 - core index']
  #allocation1 [shape = 'u32[144,128]{1,0:T(1,128)}', space=vmem, size = 0x12000, scoped, tag = 'internal scratch']
  %s0 = inlined_call_operand.hbm [shape: f32[32,128], index: 0, kind: input, shape index: {}]
  %s1 = inlined_call_operand.hbm [shape: f32[128,128], index: 1, kind: input, shape index: {}]
  %s2 = inlined_call_operand.vmem [shape: f32[1,128], index: 2, kind: input, shape index: {}]
  %s3 = inlined_call_operand.hbm [shape: f32[128,128], index: 3, kind: input, shape index: {}]
  %s4 = inlined_call_operand.vmem [shape: f32[1,128], index: 4, kind: input, shape index: {}]
  %s5 = inlined_call_operand.hbm [shape: f32[128,128], index: 5, kind: input, shape index: {}]
  %s6 = inlined_call_operand.vmem [shape: f32[1,128], index: 6, kind: input, shape index: {}]
  %s7 = inlined_call_operand.hbm [shape: f32[32,128], index: 7, kind: output, shape index: {}]
  %s8 = sld [smem:[#allocation0]]
  $region54: #{tpu_custom_call.1} parent=0
    _
  %s10 = ssub.s32 1, %s8
  %s11 = scalar_select 0, %s10, %s8
  $region1: #{tpu_custom_call.1} parent=0
    #allocation2 [shape = 'u8[16384]{0}', space=vmem, size = 0x4000, scoped, tag = 'input window, operand 0, single buffered']
    #allocation3 [shape = 's32[1]{0}', space=sflag, size = 0x4, scoped, tag = 'scoped memory for tpu_custom_call.1']
    #allocation4 [shape = 's32[1]{0}', space=sflag, size = 0x4, scoped, tag = 'scoped memory for tpu_custom_call.1']
    #allocation5 [shape = 'u8[65536]{0}', space=vmem, size = 0x10000, scoped, tag = 'input window, operand 1, single buffered']
    #allocation6 [shape = 's32[1]{0}', space=sflag, size = 0x4, scoped, tag = 'scoped memory for tpu_custom_call.1']
    #allocation7 [shape = 'u8[65536]{0}', space=vmem, size = 0x10000, scoped, tag = 'input window, operand 3, single buffered']
    #allocation8 [shape = 'u8[65536]{0}', space=vmem, size = 0x10000, scoped, tag = 'input window, operand 5, single buffered']
    #allocation9 [shape = 's32[1]{0}', space=sflag, size = 0x4, scoped, tag = 'scoped memory for tpu_custom_call.1']
    #allocation10 [shape = 'u8[16384]{0}', space=vmem, size = 0x4000, scoped, tag = 'output window, operand 0, single buffered']
    %12 = vsyncpa [#allocation3], 0
    %13 = vsyncpa [#allocation6], 0
    %14 = vsyncpa [#allocation9], 0
    %15 = vsyncpa [#allocation4], 0
    // Predicated region
    $region2: #{tpu_custom_call.1} parent=1 // pred_check
      _
    $region3: #{tpu_custom_call.1} parent=1 // pred_check_branch
      %17 = sbr.rel (0) target = $region5
    $region4: #{tpu_custom_call.1} parent=1 // pred_region
      %s19 = ssub.s32 512, 512
      %20 = vsyncadd [#allocation3], %s19
      %s21 = sshll.u32 [#allocation2], 4
      %s22 = int_to_ptr.vmem [resolvable:$true] %s21
      %27 = dma.hbm_to_vmem [thread:$0]  %s0, 512, %s22, [#allocation3], 128, 128, 8
    $region5: #{tpu_custom_call.1} parent=1 // pred_fallthru
      _
    // Predicated region
    $region6: #{tpu_custom_call.1} parent=1 // pred_check
      _
    $region7: #{tpu_custom_call.1} parent=1 // pred_check_branch
      %29 = sbr.rel (0) target = $region9
    $region8: #{tpu_custom_call.1} parent=1 // pred_region
      %s31 = ssub.s32 2048, 2048
      %32 = vsyncadd [#allocation6], %s31
      %s33 = sshll.u32 [#allocation5], 4
      %s34 = int_to_ptr.vmem [resolvable:$true] %s33
      %39 = dma.hbm_to_vmem [thread:$0]  %s1, 2048, %s34, [#allocation6], 128, 128, 8
    $region9: #{tpu_custom_call.1} parent=1 // pred_fallthru
      _
    // Predicated region
    $region10: #{tpu_custom_call.1} parent=1 // pred_check
      _
    $region11: #{tpu_custom_call.1} parent=1 // pred_check_branch
      %41 = sbr.rel (0) target = $region13
    $region12: #{tpu_custom_call.1} parent=1 // pred_region
      _
    $region13: #{tpu_custom_call.1} parent=1 // pred_fallthru
      _
    // Predicated region
    $region14: #{tpu_custom_call.1} parent=1 // pred_check
      _
    $region15: #{tpu_custom_call.1} parent=1 // pred_check_branch
      %43 = sbr.rel (0) target = $region17
    $region16: #{tpu_custom_call.1} parent=1 // pred_region
      %s45 = ssub.s32 2048, 2048
      %46 = vsyncadd [#allocation6], %s45
      %s47 = sshll.u32 [#allocation7], 4
      %s48 = int_to_ptr.vmem [resolvable:$true] %s47
      %53 = dma.hbm_to_vmem [thread:$0]  %s3, 2048, %s48, [#allocation6], 128, 128, 8
    $region17: #{tpu_custom_call.1} parent=1 // pred_fallthru
      _
    // Predicated region
    $region18: #{tpu_custom_call.1} parent=1 // pred_check
      _
    $region19: #{tpu_custom_call.1} parent=1 // pred_check_branch
      %55 = sbr.rel (0) target = $region21
    $region20: #{tpu_custom_call.1} parent=1 // pred_region
      _
    $region21: #{tpu_custom_call.1} parent=1 // pred_fallthru
      _
    // Predicated region
    $region22: #{tpu_custom_call.1} parent=1 // pred_check
      _
    $region23: #{tpu_custom_call.1} parent=1 // pred_check_branch
      %57 = sbr.rel (0) target = $region25
    $region24: #{tpu_custom_call.1} parent=1 // pred_region
      %s59 = ssub.s32 2048, 2048
      %60 = vsyncadd [#allocation9], %s59
      %s61 = sshll.u32 [#allocation8], 4
      %s62 = int_to_ptr.vmem [resolvable:$true] %s61
      %67 = dma.hbm_to_vmem [thread:$0]  %s5, 2048, %s62, [#allocation9], 128, 128, 8
    $region25: #{tpu_custom_call.1} parent=1 // pred_fallthru
      _
    // Predicated region
    $region26: #{tpu_custom_call.1} parent=1 // pred_check
      _
    $region27: #{tpu_custom_call.1} parent=1 // pred_check_branch
      %69 = sbr.rel (0) target = $region29
    $region28: #{tpu_custom_call.1} parent=1 // pred_region
      _
    $region29: #{tpu_custom_call.1} parent=1 // pred_fallthru
      _
    // Predicated region
    $region30: #{tpu_custom_call.1} parent=1 // pred_check
      _
    $region31: #{tpu_custom_call.1} parent=1 // pred_check_branch
      %71 = sbr.rel (0) target = $region33
    $region32: #{tpu_custom_call.1} parent=1 // pred_region
      %72 = dma.done [#allocation3], 512
    $region33: #{tpu_custom_call.1} parent=1 // pred_fallthru
      _
    // Predicated region
    $region34: #{tpu_custom_call.1} parent=1 // pred_check
      _
    $region35: #{tpu_custom_call.1} parent=1 // pred_check_branch
      %74 = sbr.rel (0) target = $region37
    $region36: #{tpu_custom_call.1} parent=1 // pred_region
      %75 = dma.done [#allocation6], 2048
    $region37: #{tpu_custom_call.1} parent=1 // pred_fallthru
      _
    // Predicated region
    $region38: #{tpu_custom_call.1} parent=1 // pred_check
      _
    $region39: #{tpu_custom_call.1} parent=1 // pred_check_branch
      %77 = sbr.rel (0) target = $region41
    $region40: #{tpu_custom_call.1} parent=1 // pred_region
      %78 = dma.done [#allocation6], 2048
    $region41: #{tpu_custom_call.1} parent=1 // pred_fallthru
      _
    // Predicated region
    $region42: #{tpu_custom_call.1} parent=1 // pred_check
      _
    $region43: #{tpu_custom_call.1} parent=1 // pred_check_branch
      %80 = sbr.rel (0) target = $region45
    $region44: #{tpu_custom_call.1} parent=1 // pred_region
      %81 = dma.done [#allocation9], 2048
    $region45: #{tpu_custom_call.1} parent=1 // pred_fallthru
      _
    %v82 = vld [vmem:[#allocation2] sm:$0xff]
    %v83 = vld [vmem:[#allocation2 + $0x8] sm:$0xff]
    %v84 = vld [vmem:[#allocation2 + $0x10] sm:$0xff]
    %v85 = vld [vmem:[#allocation2 + $0x18] sm:$0xff]
    %v86 = vld [vmem:[#allocation5] sm:$0xff]
    %v87 = vld [vmem:[#allocation5 + $0x8] sm:$0xff]
    %v88 = vld [vmem:[#allocation5 + $0x10] sm:$0xff]
    %v89 = vld [vmem:[#allocation5 + $0x18] sm:$0xff]
    %v90 = vld [vmem:[#allocation5 + $0x20] sm:$0xff]
    %v91 = vld [vmem:[#allocation5 + $0x28] sm:$0xff]
    %v92 = vld [vmem:[#allocation5 + $0x30] sm:$0xff]
    %v93 = vld [vmem:[#allocation5 + $0x38] sm:$0xff]
    %v94 = vld [vmem:[#allocation5 + $0x40] sm:$0xff]
    %v95 = vld [vmem:[#allocation5 + $0x48] sm:$0xff]
    %v96 = vld [vmem:[#allocation5 + $0x50] sm:$0xff]
    %v97 = vld [vmem:[#allocation5 + $0x58] sm:$0xff]
    %v98 = vld [vmem:[#allocation5 + $0x60] sm:$0xff]
    %v99 = vld [vmem:[#allocation5 + $0x68] sm:$0xff]
    %v100 = vld [vmem:[#allocation5 + $0x70] sm:$0xff]
    %v101 = vld [vmem:[#allocation5 + $0x78] sm:$0xff]
    %v102 = vld [vmem:[%s2] sm:$0x1]
    %v104 = vlaneseq
    %v105 = vshrl.u32 %v104, 7
    %v106 = vsub.s32 0, %v105
    %v107 = vrot.slane %v102, %v106
    %109 = vmatprep.subr.mxu0 0.0
    %110 = vmatpush1.msra.mxu0 %v86
    %111 = vmatprep.subr.mxu0 0.0
    %112 = vmatpush1.msra.mxu0 %v87
    %113 = vmatprep.subr.mxu0 0.0
    %114 = vmatpush1.msra.mxu0 %v88
    %115 = vmatprep.subr.mxu0 0.0
    %116 = vmatpush1.msra.mxu0 %v89
    %117 = vmatprep.subr.mxu0 0.0
    %118 = vmatpush1.msra.mxu0 %v90
    %119 = vmatprep.subr.mxu0 0.0
    %120 = vmatpush1.msra.mxu0 %v91
    %121 = vmatprep.subr.mxu0 0.0
    %122 = vmatpush1.msra.mxu0 %v92
    %123 = vmatprep.subr.mxu0 0.0
    %124 = vmatpush1.msra.mxu0 %v93
    %125 = vmatprep.subr.mxu0 0.0
    %126 = vmatpush1.msra.mxu0 %v94
    %127 = vmatprep.subr.mxu0 0.0
    %128 = vmatpush1.msra.mxu0 %v95
    %129 = vmatprep.subr.mxu0 0.0
    %130 = vmatpush1.msra.mxu0 %v96
    %131 = vmatprep.subr.mxu0 0.0
    %132 = vmatpush1.msra.mxu0 %v97
    %133 = vmatprep.subr.mxu0 0.0
    %134 = vmatpush1.msra.mxu0 %v98
    %135 = vmatprep.subr.mxu0 0.0
    %136 = vmatpush1.msra.mxu0 %v99
    %137 = vmatprep.subr.mxu0 0.0
    %138 = vmatpush1.msra.mxu0 %v100
    %139 = vmatprep.subr.mxu0 0.0
    %140 = vmatpush1.msra.mxu0 %v101
    %141 = vmatprep.subr.mxu0 0.0
    %142 = vmatpush1.msra.mxu0 0.0
    %143 = vmatprep.subr.mxu0 0.0
    %144 = vmatpush1.msra.mxu0 0.0
    %145 = vmatprep.subr.mxu0 0.0
    %146 = vmatpush1.msra.mxu0 0.0
    %147 = vmatprep.subr.mxu0 0.0
    %148 = vmatpush1.msra.mxu0 0.0
    %149 = vmatprep.subr.mxu0 0.0
    %150 = vmatpush1.msra.mxu0 0.0
    %151 = vmatprep.subr.mxu0 0.0
    %152 = vmatpush1.msra.mxu0 0.0
    %153 = vmatprep.subr.mxu0 0.0
    %154 = vmatpush1.msra.mxu0 0.0
    %155 = vmatprep.subr.mxu0 0.0
    %156 = vmatpush1.msra.mxu0 0.0
    %157 = vmatprep.subr.mxu0 0.0
    %158 = vmatpush1.msra.mxu0 0.0
    %159 = vmatprep.subr.mxu0 0.0
    %160 = vmatpush1.msra.mxu0 0.0
    %161 = vmatprep.subr.mxu0 0.0
    %162 = vmatpush1.msra.mxu0 0.0
    %163 = vmatprep.subr.mxu0 0.0
    %164 = vmatpush1.msra.mxu0 0.0
    %165 = vmatprep.subr.mxu0 0.0
    %166 = vmatpush1.msra.mxu0 0.0
    %167 = vmatprep.subr.mxu0 0.0
    %168 = vmatpush1.msra.mxu0 0.0
    %169 = vmatprep.subr.mxu0 0.0
    %170 = vmatpush1.msra.mxu0 0.0
    %171 = vmatprep.subr.mxu0 0.0
    %172 = vmatpush1.msra.mxu0 0.0
    %173 = vmatprep.mubr.f32.mxu0 0.0
    %174 = vmatmul.mubr.f32.gmra.mrb[0].mxu0 %v82
    %v175 = vpop.f32.mrb[0].mxu0
    %v176 = vadd.f32 %v107, %v175
    %v177 = vpop.f32.mrb[0].mxu0
    %178 = vmatprep.mubr.f32.mxu0 0.0
    %179 = vmatmul.mubr.f32.gmra.mrb[0].mxu0 %v83
    %v180 = vpop.f32.mrb[0].mxu0
    %v181 = vadd.f32 %v107, %v180
    %v182 = vpop.f32.mrb[0].mxu0
    %183 = vmatprep.mubr.f32.mxu0 0.0
    %184 = vmatmul.mubr.f32.gmra.mrb[0].mxu0 %v84
    %v185 = vpop.f32.mrb[0].mxu0
    %v186 = vadd.f32 %v107, %v185
    %v187 = vpop.f32.mrb[0].mxu0
    %188 = vmatprep.mubr.f32.mxu0 0.0
    %189 = vmatmul.mubr.f32.gmra.mrb[0].mxu0 %v85
    %v190 = vpop.f32.mrb[0].mxu0
    %v191 = vadd.f32 %v107, %v190
    %v192 = vpop.f32.mrb[0].mxu0
    %193 = vdwg.mxu0
    %v194 = vmul.f32 %v176, 0.2
    %v195 = vmul.f32 %v181, 0.2
    %v196 = vmul.f32 %v186, 0.2
    %v197 = vmul.f32 %v191, 0.2
    %v198 = vmax.f32 %v176, %v194
    %v199 = vmax.f32 %v181, %v195
    %v200 = vmax.f32 %v186, %v196
    %v201 = vmax.f32 %v191, %v197
    %v202 = vld [vmem:[#allocation7] sm:$0xff]
    %v203 = vld [vmem:[#allocation7 + $0x8] sm:$0xff]
    %v204 = vld [vmem:[#allocation7 + $0x10] sm:$0xff]
    %v205 = vld [vmem:[#allocation7 + $0x18] sm:$0xff]
    %v206 = vld [vmem:[#allocation7 + $0x20] sm:$0xff]
    %v207 = vld [vmem:[#allocation7 + $0x28] sm:$0xff]
    %v208 = vld [vmem:[#allocation7 + $0x30] sm:$0xff]
    %v209 = vld [vmem:[#allocation7 + $0x38] sm:$0xff]
    %v210 = vld [vmem:[#allocation7 + $0x40] sm:$0xff]
    %v211 = vld [vmem:[#allocation7 + $0x48] sm:$0xff]
    %v212 = vld [vmem:[#allocation7 + $0x50] sm:$0xff]
    %v213 = vld [vmem:[#allocation7 + $0x58] sm:$0xff]
    %v214 = vld [vmem:[#allocation7 + $0x60] sm:$0xff]
    %v215 = vld [vmem:[#allocation7 + $0x68] sm:$0xff]
    %v216 = vld [vmem:[#allocation7 + $0x70] sm:$0xff]
    %v217 = vld [vmem:[#allocation7 + $0x78] sm:$0xff]
    %v218 = vld [vmem:[%s4] sm:$0x1]
    %v220 = vlaneseq
    %v221 = vshrl.u32 %v220, 7
    %v222 = vsub.s32 0, %v221
    %v223 = vrot.slane %v218, %v222
    %225 = vmatprep.subr.mxu0 0.0
    %226 = vmatpush1.msra.mxu0 %v202
    %227 = vmatprep.subr.mxu0 0.0
    %228 = vmatpush1.msra.mxu0 %v203
    %229 = vmatprep.subr.mxu0 0.0
    %230 = vmatpush1.msra.mxu0 %v204
    %231 = vmatprep.subr.mxu0 0.0
    %232 = vmatpush1.msra.mxu0 %v205
    %233 = vmatprep.subr.mxu0 0.0
    %234 = vmatpush1.msra.mxu0 %v206
    %235 = vmatprep.subr.mxu0 0.0
    %236 = vmatpush1.msra.mxu0 %v207
    %237 = vmatprep.subr.mxu0 0.0
    %238 = vmatpush1.msra.mxu0 %v208
    %239 = vmatprep.subr.mxu0 0.0
    %240 = vmatpush1.msra.mxu0 %v209
    %241 = vmatprep.subr.mxu0 0.0
    %242 = vmatpush1.msra.mxu0 %v210
    %243 = vmatprep.subr.mxu0 0.0
    %244 = vmatpush1.msra.mxu0 %v211
    %245 = vmatprep.subr.mxu0 0.0
    %246 = vmatpush1.msra.mxu0 %v212
    %247 = vmatprep.subr.mxu0 0.0
    %248 = vmatpush1.msra.mxu0 %v213
    %249 = vmatprep.subr.mxu0 0.0
    %250 = vmatpush1.msra.mxu0 %v214
    %251 = vmatprep.subr.mxu0 0.0
    %252 = vmatpush1.msra.mxu0 %v215
    %253 = vmatprep.subr.mxu0 0.0
    %254 = vmatpush1.msra.mxu0 %v216
    %255 = vmatprep.subr.mxu0 0.0
    %256 = vmatpush1.msra.mxu0 %v217
    %257 = vmatprep.subr.mxu0 0.0
    %258 = vmatpush1.msra.mxu0 0.0
    %259 = vmatprep.subr.mxu0 0.0
    %260 = vmatpush1.msra.mxu0 0.0
    %261 = vmatprep.subr.mxu0 0.0
    %262 = vmatpush1.msra.mxu0 0.0
    %263 = vmatprep.subr.mxu0 0.0
    %264 = vmatpush1.msra.mxu0 0.0
    %265 = vmatprep.subr.mxu0 0.0
    %266 = vmatpush1.msra.mxu0 0.0
    %267 = vmatprep.subr.mxu0 0.0
    %268 = vmatpush1.msra.mxu0 0.0
    %269 = vmatprep.subr.mxu0 0.0
    %270 = vmatpush1.msra.mxu0 0.0
    %271 = vmatprep.subr.mxu0 0.0
    %272 = vmatpush1.msra.mxu0 0.0
    %273 = vmatprep.subr.mxu0 0.0
    %274 = vmatpush1.msra.mxu0 0.0
    %275 = vmatprep.subr.mxu0 0.0
    %276 = vmatpush1.msra.mxu0 0.0
    %277 = vmatprep.subr.mxu0 0.0
    %278 = vmatpush1.msra.mxu0 0.0
    %279 = vmatprep.subr.mxu0 0.0
    %280 = vmatpush1.msra.mxu0 0.0
    %281 = vmatprep.subr.mxu0 0.0
    %282 = vmatpush1.msra.mxu0 0.0
    %283 = vmatprep.subr.mxu0 0.0
    %284 = vmatpush1.msra.mxu0 0.0
    %285 = vmatprep.subr.mxu0 0.0
    %286 = vmatpush1.msra.mxu0 0.0
    %287 = vmatprep.subr.mxu0 0.0
    %288 = vmatpush1.msra.mxu0 0.0
    %289 = vmatprep.mubr.f32.mxu0 0.0
    %290 = vmatmul.mubr.f32.gmra.mrb[0].mxu0 %v198
    %v291 = vpop.f32.mrb[0].mxu0
    %v292 = vadd.f32 %v223, %v291
    %v293 = vpop.f32.mrb[0].mxu0
    %294 = vmatprep.mubr.f32.mxu0 0.0
    %295 = vmatmul.mubr.f32.gmra.mrb[0].mxu0 %v199
    %v296 = vpop.f32.mrb[0].mxu0
    %v297 = vadd.f32 %v223, %v296
    %v298 = vpop.f32.mrb[0].mxu0
    %299 = vmatprep.mubr.f32.mxu0 0.0
    %300 = vmatmul.mubr.f32.gmra.mrb[0].mxu0 %v200
    %v301 = vpop.f32.mrb[0].mxu0
    %v302 = vadd.f32 %v223, %v301
    %v303 = vpop.f32.mrb[0].mxu0
    %304 = vmatprep.mubr.f32.mxu0 0.0
    %305 = vmatmul.mubr.f32.gmra.mrb[0].mxu0 %v201
    %v306 = vpop.f32.mrb[0].mxu0
    %v307 = vadd.f32 %v223, %v306
    %v308 = vpop.f32.mrb[0].mxu0
    %309 = vdwg.mxu0
    %v310 = vmul.f32 %v292, 0.2
    %v311 = vmul.f32 %v297, 0.2
    %v312 = vmul.f32 %v302, 0.2
    %v313 = vmul.f32 %v307, 0.2
    %v314 = vmax.f32 %v292, %v310
    %v315 = vmax.f32 %v297, %v311
    %v316 = vmax.f32 %v302, %v312
    %v317 = vmax.f32 %v307, %v313
    %v318 = vld [vmem:[#allocation8] sm:$0xff]
    %v319 = vld [vmem:[#allocation8 + $0x8] sm:$0xff]
    %v320 = vld [vmem:[#allocation8 + $0x10] sm:$0xff]
    %v321 = vld [vmem:[#allocation8 + $0x18] sm:$0xff]
    %v322 = vld [vmem:[#allocation8 + $0x20] sm:$0xff]
    %v323 = vld [vmem:[#allocation8 + $0x28] sm:$0xff]
    %v324 = vld [vmem:[#allocation8 + $0x30] sm:$0xff]
    %v325 = vld [vmem:[#allocation8 + $0x38] sm:$0xff]
    %v326 = vld [vmem:[#allocation8 + $0x40] sm:$0xff]
    %v327 = vld [vmem:[#allocation8 + $0x48] sm:$0xff]
    %v328 = vld [vmem:[#allocation8 + $0x50] sm:$0xff]
    %v329 = vld [vmem:[#allocation8 + $0x58] sm:$0xff]
    %v330 = vld [vmem:[#allocation8 + $0x60] sm:$0xff]
    %v331 = vld [vmem:[#allocation8 + $0x68] sm:$0xff]
    %v332 = vld [vmem:[#allocation8 + $0x70] sm:$0xff]
    %v333 = vld [vmem:[#allocation8 + $0x78] sm:$0xff]
    %v334 = vld [vmem:[%s6] sm:$0x1]
    %v336 = vlaneseq
    %v337 = vshrl.u32 %v336, 7
    %v338 = vsub.s32 0, %v337
    %v339 = vrot.slane %v334, %v338
    %341 = vmatprep.subr.mxu0 0.0
    %342 = vmatpush1.msra.mxu0 %v318
    %343 = vmatprep.subr.mxu0 0.0
    %344 = vmatpush1.msra.mxu0 %v319
    %345 = vmatprep.subr.mxu0 0.0
    %346 = vmatpush1.msra.mxu0 %v320
    %347 = vmatprep.subr.mxu0 0.0
    %348 = vmatpush1.msra.mxu0 %v321
    %349 = vmatprep.subr.mxu0 0.0
    %350 = vmatpush1.msra.mxu0 %v322
    %351 = vmatprep.subr.mxu0 0.0
    %352 = vmatpush1.msra.mxu0 %v323
    %353 = vmatprep.subr.mxu0 0.0
    %354 = vmatpush1.msra.mxu0 %v324
    %355 = vmatprep.subr.mxu0 0.0
    %356 = vmatpush1.msra.mxu0 %v325
    %357 = vmatprep.subr.mxu0 0.0
    %358 = vmatpush1.msra.mxu0 %v326
    %359 = vmatprep.subr.mxu0 0.0
    %360 = vmatpush1.msra.mxu0 %v327
    %361 = vmatprep.subr.mxu0 0.0
    %362 = vmatpush1.msra.mxu0 %v328
    %363 = vmatprep.subr.mxu0 0.0
    %364 = vmatpush1.msra.mxu0 %v329
    %365 = vmatprep.subr.mxu0 0.0
    %366 = vmatpush1.msra.mxu0 %v330
    %367 = vmatprep.subr.mxu0 0.0
    %368 = vmatpush1.msra.mxu0 %v331
    %369 = vmatprep.subr.mxu0 0.0
    %370 = vmatpush1.msra.mxu0 %v332
    %371 = vmatprep.subr.mxu0 0.0
    %372 = vmatpush1.msra.mxu0 %v333
    %373 = vmatprep.subr.mxu0 0.0
    %374 = vmatpush1.msra.mxu0 0.0
    %375 = vmatprep.subr.mxu0 0.0
    %376 = vmatpush1.msra.mxu0 0.0
    %377 = vmatprep.subr.mxu0 0.0
    %378 = vmatpush1.msra.mxu0 0.0
    %379 = vmatprep.subr.mxu0 0.0
    %380 = vmatpush1.msra.mxu0 0.0
    %381 = vmatprep.subr.mxu0 0.0
    %382 = vmatpush1.msra.mxu0 0.0
    %383 = vmatprep.subr.mxu0 0.0
    %384 = vmatpush1.msra.mxu0 0.0
    %385 = vmatprep.subr.mxu0 0.0
    %386 = vmatpush1.msra.mxu0 0.0
    %387 = vmatprep.subr.mxu0 0.0
    %388 = vmatpush1.msra.mxu0 0.0
    %389 = vmatprep.subr.mxu0 0.0
    %390 = vmatpush1.msra.mxu0 0.0
    %391 = vmatprep.subr.mxu0 0.0
    %392 = vmatpush1.msra.mxu0 0.0
    %393 = vmatprep.subr.mxu0 0.0
    %394 = vmatpush1.msra.mxu0 0.0
    %395 = vmatprep.subr.mxu0 0.0
    %396 = vmatpush1.msra.mxu0 0.0
    %397 = vmatprep.subr.mxu0 0.0
    %398 = vmatpush1.msra.mxu0 0.0
    %399 = vmatprep.subr.mxu0 0.0
    %400 = vmatpush1.msra.mxu0 0.0
    %401 = vmatprep.subr.mxu0 0.0
    %402 = vmatpush1.msra.mxu0 0.0
    %403 = vmatprep.subr.mxu0 0.0
    %404 = vmatpush1.msra.mxu0 0.0
    %405 = vmatprep.mubr.f32.mxu0 0.0
    %406 = vmatmul.mubr.f32.gmra.mrb[0].mxu0 %v314
    %v407 = vpop.f32.mrb[0].mxu0
    %v408 = vadd.f32 %v339, %v407
    %v409 = vpop.f32.mrb[0].mxu0
    %410 = vmatprep.mubr.f32.mxu0 0.0
    %411 = vmatmul.mubr.f32.gmra.mrb[0].mxu0 %v315
    %v412 = vpop.f32.mrb[0].mxu0
    %v413 = vadd.f32 %v339, %v412
    %v414 = vpop.f32.mrb[0].mxu0
    %415 = vmatprep.mubr.f32.mxu0 0.0
    %416 = vmatmul.mubr.f32.gmra.mrb[0].mxu0 %v316
    %v417 = vpop.f32.mrb[0].mxu0
    %v418 = vadd.f32 %v339, %v417
    %v419 = vpop.f32.mrb[0].mxu0
    %420 = vmatprep.mubr.f32.mxu0 0.0
    %421 = vmatmul.mubr.f32.gmra.mrb[0].mxu0 %v317
    %v422 = vpop.f32.mrb[0].mxu0
    %v423 = vadd.f32 %v339, %v422
    %v424 = vpop.f32.mrb[0].mxu0
    %425 = vdwg.mxu0
    %v426 = vtanh.pop %v408
    %v427 = vtanh.pop %v413
    %v428 = vtanh.pop %v418
    %v429 = vtanh.pop %v423
    %430 = vst [vmem:[#allocation10] sm:$0xff] %v426
    %431 = vst [vmem:[#allocation10 + $0x8] sm:$0xff] %v427
    %432 = vst [vmem:[#allocation10 + $0x10] sm:$0xff] %v428
    %433 = vst [vmem:[#allocation10 + $0x18] sm:$0xff] %v429
    // Predicated region
    $region46: #{tpu_custom_call.1} parent=1 // pred_check
      _
    $region47: #{tpu_custom_call.1} parent=1 // pred_check_branch
      %435 = sbr.rel (0) target = $region49
    $region48: #{tpu_custom_call.1} parent=1 // pred_region
      %s437 = ssub.s32 512, 512
      %438 = vsyncadd [#allocation4], %s437
      %s439 = sshll.u32 [#allocation10], 4
      %s440 = int_to_ptr.vmem [resolvable:$true] %s439
      %445 = dma.vmem_to_hbm [thread:$0]  %s440, 512, %s7, [#allocation4], 128, 128, 8
    $region49: #{tpu_custom_call.1} parent=1 // pred_fallthru
      _
    // Predicated region
    $region50: #{tpu_custom_call.1} parent=1 // pred_check
      _
    $region51: #{tpu_custom_call.1} parent=1 // pred_check_branch
      %447 = sbr.rel (0) target = $region53
    $region52: #{tpu_custom_call.1} parent=1 // pred_region
      %448 = dma.done [#allocation4], 512
    $region53: #{tpu_custom_call.1} parent=1 // pred_fallthru
      _
    %449 = vsyncpa [#allocation3], 1
    %450 = vsyncpa [#allocation6], 1
    %451 = vsyncpa [#allocation9], 1
    %452 = vsyncpa [#allocation4], 1

// kernel: tpu_custom_call.1
$region0: #{tpu_custom_call.1}
  #allocation0 [shape = 'u32[]', space=smem, size = 0x4, offset = 0x4, fixed_abs, tag = 'smem constant byte address 0x4 - core index']
  #allocation1 [shape = 'u32[144,128]{1,0:T(1,128)}', space=vmem, size = 0x12000, scoped, tag = 'internal scratch']
  %s0 = inlined_call_operand.hbm [shape: f32[32,128], index: 0, kind: input, shape index: {}]
  %s1 = inlined_call_operand.hbm [shape: f32[128,128], index: 1, kind: input, shape index: {}]
  %s2 = inlined_call_operand.vmem [shape: f32[1,128], index: 2, kind: input, shape index: {}]
  %s3 = inlined_call_operand.hbm [shape: f32[128,128], index: 3, kind: input, shape index: {}]
  %s4 = inlined_call_operand.vmem [shape: f32[1,128], index: 4, kind: input, shape index: {}]
  %s5 = inlined_call_operand.hbm [shape: f32[128,128], index: 5, kind: input, shape index: {}]
  %s6 = inlined_call_operand.vmem [shape: f32[1,128], index: 6, kind: input, shape index: {}]
  %s7 = inlined_call_operand.hbm [shape: f32[32,128], index: 7, kind: output, shape index: {}]
  %s8 = sld [smem:[#allocation0]]
  $region54: #{tpu_custom_call.1} parent=0
    _
  %s10 = ssub.s32 1, %s8
  %s11 = scalar_select 0, %s10, %s8
  $region1: #{tpu_custom_call.1} parent=0
    #allocation2 [shape = 'u8[16384]{0}', space=vmem, size = 0x4000, scoped, tag = 'input window, operand 0, single buffered']
    #allocation3 [shape = 's32[1]{0}', space=sflag, size = 0x4, scoped, tag = 'scoped memory for tpu_custom_call.1']
    #allocation4 [shape = 's32[1]{0}', space=sflag, size = 0x4, scoped, tag = 'scoped memory for tpu_custom_call.1']
    #allocation5 [shape = 'u8[65536]{0}', space=vmem, size = 0x10000, scoped, tag = 'input window, operand 1, single buffered']
    #allocation6 [shape = 's32[1]{0}', space=sflag, size = 0x4, scoped, tag = 'scoped memory for tpu_custom_call.1']
    #allocation7 [shape = 'u8[65536]{0}', space=vmem, size = 0x10000, scoped, tag = 'input window, operand 3, single buffered']
    #allocation8 [shape = 'u8[65536]{0}', space=vmem, size = 0x10000, scoped, tag = 'input window, operand 5, single buffered']
    #allocation9 [shape = 's32[1]{0}', space=sflag, size = 0x4, scoped, tag = 'scoped memory for tpu_custom_call.1']
    #allocation10 [shape = 'u8[16384]{0}', space=vmem, size = 0x4000, scoped, tag = 'output window, operand 0, single buffered']
    %12 = vsyncpa [#allocation3], 0
    %13 = vsyncpa [#allocation6], 0
    %14 = vsyncpa [#allocation9], 0
    %15 = vsyncpa [#allocation4], 0
    // Predicated region
    $region2: #{tpu_custom_call.1} parent=1 // pred_check
      _
    $region3: #{tpu_custom_call.1} parent=1 // pred_check_branch
      %17 = sbr.rel (0) target = $region5
    $region4: #{tpu_custom_call.1} parent=1 // pred_region
      %s19 = ssub.s32 512, 512
      %20 = vsyncadd [#allocation3], %s19
      %s21 = sshll.u32 [#allocation2], 4
      %s22 = int_to_ptr.vmem [resolvable:$true] %s21
      %27 = dma.hbm_to_vmem [thread:$0]  %s0, 512, %s22, [#allocation3], 128, 128, 8
    $region5: #{tpu_custom_call.1} parent=1 // pred_fallthru
      _
    // Predicated region
    $region6: #{tpu_custom_call.1} parent=1 // pred_check
      _
    $region7: #{tpu_custom_call.1} parent=1 // pred_check_branch
      %29 = sbr.rel (0) target = $region9
    $region8: #{tpu_custom_call.1} parent=1 // pred_region
      %s31 = ssub.s32 2048, 2048
      %32 = vsyncadd [#allocation6], %s31
      %s33 = sshll.u32 [#allocation5], 4
      %s34 = int_to_ptr.vmem [resolvable:$true] %s33
      %39 = dma.hbm_to_vmem [thread:$0]  %s1, 2048, %s34, [#allocation6], 128, 128, 8
    $region9: #{tpu_custom_call.1} parent=1 // pred_fallthru
      _
    // Predicated region
    $region10: #{tpu_custom_call.1} parent=1 // pred_check
      _
    $region11: #{tpu_custom_call.1} parent=1 // pred_check_branch
      %41 = sbr.rel (0) target = $region13
    $region12: #{tpu_custom_call.1} parent=1 // pred_region
      _
    $region13: #{tpu_custom_call.1} parent=1 // pred_fallthru
      _
    // Predicated region
    $region14: #{tpu_custom_call.1} parent=1 // pred_check
      _
    $region15: #{tpu_custom_call.1} parent=1 // pred_check_branch
      %43 = sbr.rel (0) target = $region17
    $region16: #{tpu_custom_call.1} parent=1 // pred_region
      %s45 = ssub.s32 2048, 2048
      %46 = vsyncadd [#allocation6], %s45
      %s47 = sshll.u32 [#allocation7], 4
      %s48 = int_to_ptr.vmem [resolvable:$true] %s47
      %53 = dma.hbm_to_vmem [thread:$0]  %s3, 2048, %s48, [#allocation6], 128, 128, 8
    $region17: #{tpu_custom_call.1} parent=1 // pred_fallthru
      _
    // Predicated region
    $region18: #{tpu_custom_call.1} parent=1 // pred_check
      _
    $region19: #{tpu_custom_call.1} parent=1 // pred_check_branch
      %55 = sbr.rel (0) target = $region21
    $region20: #{tpu_custom_call.1} parent=1 // pred_region
      _
    $region21: #{tpu_custom_call.1} parent=1 // pred_fallthru
      _
    // Predicated region
    $region22: #{tpu_custom_call.1} parent=1 // pred_check
      _
    $region23: #{tpu_custom_call.1} parent=1 // pred_check_branch
      %57 = sbr.rel (0) target = $region25
    $region24: #{tpu_custom_call.1} parent=1 // pred_region
      %s59 = ssub.s32 2048, 2048
      %60 = vsyncadd [#allocation9], %s59
      %s61 = sshll.u32 [#allocation8], 4
      %s62 = int_to_ptr.vmem [resolvable:$true] %s61
      %67 = dma.hbm_to_vmem [thread:$0]  %s5, 2048, %s62, [#allocation9], 128, 128, 8
    $region25: #{tpu_custom_call.1} parent=1 // pred_fallthru
      _
    // Predicated region
    $region26: #{tpu_custom_call.1} parent=1 // pred_check
      _
    $region27: #{tpu_custom_call.1} parent=1 // pred_check_branch
      %69 = sbr.rel (0) target = $region29
    $region28: #{tpu_custom_call.1} parent=1 // pred_region
      _
    $region29: #{tpu_custom_call.1} parent=1 // pred_fallthru
      _
    // Predicated region
    $region30: #{tpu_custom_call.1} parent=1 // pred_check
      _
    $region31: #{tpu_custom_call.1} parent=1 // pred_check_branch
      %71 = sbr.rel (0) target = $region33
    $region32: #{tpu_custom_call.1} parent=1 // pred_region
      %72 = dma.done [#allocation3], 512
    $region33: #{tpu_custom_call.1} parent=1 // pred_fallthru
      _
    // Predicated region
    $region34: #{tpu_custom_call.1} parent=1 // pred_check
      _
    $region35: #{tpu_custom_call.1} parent=1 // pred_check_branch
      %74 = sbr.rel (0) target = $region37
    $region36: #{tpu_custom_call.1} parent=1 // pred_region
      %75 = dma.done [#allocation6], 2048
    $region37: #{tpu_custom_call.1} parent=1 // pred_fallthru
      _
    // Predicated region
    $region38: #{tpu_custom_call.1} parent=1 // pred_check
      _
    $region39: #{tpu_custom_call.1} parent=1 // pred_check_branch
      %77 = sbr.rel (0) target = $region41
    $region40: #{tpu_custom_call.1} parent=1 // pred_region
      %78 = dma.done [#allocation6], 2048
    $region41: #{tpu_custom_call.1} parent=1 // pred_fallthru
      _
    // Predicated region
    $region42: #{tpu_custom_call.1} parent=1 // pred_check
      _
    $region43: #{tpu_custom_call.1} parent=1 // pred_check_branch
      %80 = sbr.rel (0) target = $region45
    $region44: #{tpu_custom_call.1} parent=1 // pred_region
      %81 = dma.done [#allocation9], 2048
    $region45: #{tpu_custom_call.1} parent=1 // pred_fallthru
      _
    %v82 = vld [vmem:[#allocation2] sm:$0xff]
    %v83 = vld [vmem:[#allocation2 + $0x8] sm:$0xff]
    %v84 = vld [vmem:[#allocation2 + $0x10] sm:$0xff]
    %v85 = vld [vmem:[#allocation2 + $0x18] sm:$0xff]
    %v86 = vld [vmem:[#allocation5] sm:$0xff]
    %v87 = vld [vmem:[#allocation5 + $0x8] sm:$0xff]
    %v88 = vld [vmem:[#allocation5 + $0x10] sm:$0xff]
    %v89 = vld [vmem:[#allocation5 + $0x18] sm:$0xff]
    %v90 = vld [vmem:[#allocation5 + $0x20] sm:$0xff]
    %v91 = vld [vmem:[#allocation5 + $0x28] sm:$0xff]
    %v92 = vld [vmem:[#allocation5 + $0x30] sm:$0xff]
    %v93 = vld [vmem:[#allocation5 + $0x38] sm:$0xff]
    %v94 = vld [vmem:[#allocation5 + $0x40] sm:$0xff]
    %v95 = vld [vmem:[#allocation5 + $0x48] sm:$0xff]
    %v96 = vld [vmem:[#allocation5 + $0x50] sm:$0xff]
    %v97 = vld [vmem:[#allocation5 + $0x58] sm:$0xff]
    %v98 = vld [vmem:[#allocation5 + $0x60] sm:$0xff]
    %v99 = vld [vmem:[#allocation5 + $0x68] sm:$0xff]
    %v100 = vld [vmem:[#allocation5 + $0x70] sm:$0xff]
    %v101 = vld [vmem:[#allocation5 + $0x78] sm:$0xff]
    %v102 = vld [vmem:[%s2] sm:$0x1]
    %v104 = vlaneseq
    %v105 = vshrl.u32 %v104, 7
    %v106 = vsub.s32 0, %v105
    %v107 = vrot.slane %v102, %v106
    %109 = vmatprep.subr.mxu0 0.0
    %110 = vmatpush1.msra.mxu0 %v86
    %111 = vmatprep.subr.mxu0 0.0
    %112 = vmatpush1.msra.mxu0 %v87
    %113 = vmatprep.subr.mxu0 0.0
    %114 = vmatpush1.msra.mxu0 %v88
    %115 = vmatprep.subr.mxu0 0.0
    %116 = vmatpush1.msra.mxu0 %v89
    %117 = vmatprep.subr.mxu0 0.0
    %118 = vmatpush1.msra.mxu0 %v90
    %119 = vmatprep.subr.mxu0 0.0
    %120 = vmatpush1.msra.mxu0 %v91
    %121 = vmatprep.subr.mxu0 0.0
    %122 = vmatpush1.msra.mxu0 %v92
    %123 = vmatprep.subr.mxu0 0.0
    %124 = vmatpush1.msra.mxu0 %v93
    %125 = vmatprep.subr.mxu0 0.0
    %126 = vmatpush1.msra.mxu0 %v94
    %127 = vmatprep.subr.mxu0 0.0
    %128 = vmatpush1.msra.mxu0 %v95
    %129 = vmatprep.subr.mxu0 0.0
    %130 = vmatpush1.msra.mxu0 %v96
    %131 = vmatprep.subr.mxu0 0.0
    %132 = vmatpush1.msra.mxu0 %v97
    %133 = vmatprep.subr.mxu0 0.0
    %134 = vmatpush1.msra.mxu0 %v98
    %135 = vmatprep.subr.mxu0 0.0
    %136 = vmatpush1.msra.mxu0 %v99
    %137 = vmatprep.subr.mxu0 0.0
    %138 = vmatpush1.msra.mxu0 %v100
    %139 = vmatprep.subr.mxu0 0.0
    %140 = vmatpush1.msra.mxu0 %v101
    %141 = vmatprep.subr.mxu0 0.0
    %142 = vmatpush1.msra.mxu0 0.0
    %143 = vmatprep.subr.mxu0 0.0
    %144 = vmatpush1.msra.mxu0 0.0
    %145 = vmatprep.subr.mxu0 0.0
    %146 = vmatpush1.msra.mxu0 0.0
    %147 = vmatprep.subr.mxu0 0.0
    %148 = vmatpush1.msra.mxu0 0.0
    %149 = vmatprep.subr.mxu0 0.0
    %150 = vmatpush1.msra.mxu0 0.0
    %151 = vmatprep.subr.mxu0 0.0
    %152 = vmatpush1.msra.mxu0 0.0
    %153 = vmatprep.subr.mxu0 0.0
    %154 = vmatpush1.msra.mxu0 0.0
    %155 = vmatprep.subr.mxu0 0.0
    %156 = vmatpush1.msra.mxu0 0.0
    %157 = vmatprep.subr.mxu0 0.0
    %158 = vmatpush1.msra.mxu0 0.0
    %159 = vmatprep.subr.mxu0 0.0
    %160 = vmatpush1.msra.mxu0 0.0
    %161 = vmatprep.subr.mxu0 0.0
    %162 = vmatpush1.msra.mxu0 0.0
    %163 = vmatprep.subr.mxu0 0.0
    %164 = vmatpush1.msra.mxu0 0.0
    %165 = vmatprep.subr.mxu0 0.0
    %166 = vmatpush1.msra.mxu0 0.0
    %167 = vmatprep.subr.mxu0 0.0
    %168 = vmatpush1.msra.mxu0 0.0
    %169 = vmatprep.subr.mxu0 0.0
    %170 = vmatpush1.msra.mxu0 0.0
    %171 = vmatprep.subr.mxu0 0.0
    %172 = vmatpush1.msra.mxu0 0.0
    %173 = vmatprep.mubr.f32.mxu0 0.0
    %174 = vmatmul.mubr.f32.gmra.mrb[0].mxu0 %v82
    %v175 = vpop.f32.mrb[0].mxu0
    %v176 = vadd.f32 %v107, %v175
    %v177 = vpop.f32.mrb[0].mxu0
    %178 = vmatprep.mubr.f32.mxu0 0.0
    %179 = vmatmul.mubr.f32.gmra.mrb[0].mxu0 %v83
    %v180 = vpop.f32.mrb[0].mxu0
    %v181 = vadd.f32 %v107, %v180
    %v182 = vpop.f32.mrb[0].mxu0
    %183 = vmatprep.mubr.f32.mxu0 0.0
    %184 = vmatmul.mubr.f32.gmra.mrb[0].mxu0 %v84
    %v185 = vpop.f32.mrb[0].mxu0
    %v186 = vadd.f32 %v107, %v185
    %v187 = vpop.f32.mrb[0].mxu0
    %188 = vmatprep.mubr.f32.mxu0 0.0
    %189 = vmatmul.mubr.f32.gmra.mrb[0].mxu0 %v85
    %v190 = vpop.f32.mrb[0].mxu0
    %v191 = vadd.f32 %v107, %v190
    %v192 = vpop.f32.mrb[0].mxu0
    %193 = vdwg.mxu0
    %v194 = vmul.f32 %v176, 0.2
    %v195 = vmul.f32 %v181, 0.2
    %v196 = vmul.f32 %v186, 0.2
    %v197 = vmul.f32 %v191, 0.2
    %v198 = vmax.f32 %v176, %v194
    %v199 = vmax.f32 %v181, %v195
    %v200 = vmax.f32 %v186, %v196
    %v201 = vmax.f32 %v191, %v197
    %v202 = vld [vmem:[#allocation7] sm:$0xff]
    %v203 = vld [vmem:[#allocation7 + $0x8] sm:$0xff]
    %v204 = vld [vmem:[#allocation7 + $0x10] sm:$0xff]
    %v205 = vld [vmem:[#allocation7 + $0x18] sm:$0xff]
    %v206 = vld [vmem:[#allocation7 + $0x20] sm:$0xff]
    %v207 = vld [vmem:[#allocation7 + $0x28] sm:$0xff]
    %v208 = vld [vmem:[#allocation7 + $0x30] sm:$0xff]
    %v209 = vld [vmem:[#allocation7 + $0x38] sm:$0xff]
    %v210 = vld [vmem:[#allocation7 + $0x40] sm:$0xff]
    %v211 = vld [vmem:[#allocation7 + $0x48] sm:$0xff]
    %v212 = vld [vmem:[#allocation7 + $0x50] sm:$0xff]
    %v213 = vld [vmem:[#allocation7 + $0x58] sm:$0xff]
    %v214 = vld [vmem:[#allocation7 + $0x60] sm:$0xff]
    %v215 = vld [vmem:[#allocation7 + $0x68] sm:$0xff]
    %v216 = vld [vmem:[#allocation7 + $0x70] sm:$0xff]
    %v217 = vld [vmem:[#allocation7 + $0x78] sm:$0xff]
    %v218 = vld [vmem:[%s4] sm:$0x1]
    %v220 = vlaneseq
    %v221 = vshrl.u32 %v220, 7
    %v222 = vsub.s32 0, %v221
    %v223 = vrot.slane %v218, %v222
    %225 = vmatprep.subr.mxu0 0.0
    %226 = vmatpush1.msra.mxu0 %v202
    %227 = vmatprep.subr.mxu0 0.0
    %228 = vmatpush1.msra.mxu0 %v203
    %229 = vmatprep.subr.mxu0 0.0
    %230 = vmatpush1.msra.mxu0 %v204
    %231 = vmatprep.subr.mxu0 0.0
    %232 = vmatpush1.msra.mxu0 %v205
    %233 = vmatprep.subr.mxu0 0.0
    %234 = vmatpush1.msra.mxu0 %v206
    %235 = vmatprep.subr.mxu0 0.0
    %236 = vmatpush1.msra.mxu0 %v207
    %237 = vmatprep.subr.mxu0 0.0
    %238 = vmatpush1.msra.mxu0 %v208
    %239 = vmatprep.subr.mxu0 0.0
    %240 = vmatpush1.msra.mxu0 %v209
    %241 = vmatprep.subr.mxu0 0.0
    %242 = vmatpush1.msra.mxu0 %v210
    %243 = vmatprep.subr.mxu0 0.0
    %244 = vmatpush1.msra.mxu0 %v211
    %245 = vmatprep.subr.mxu0 0.0
    %246 = vmatpush1.msra.mxu0 %v212
    %247 = vmatprep.subr.mxu0 0.0
    %248 = vmatpush1.msra.mxu0 %v213
    %249 = vmatprep.subr.mxu0 0.0
    %250 = vmatpush1.msra.mxu0 %v214
    %251 = vmatprep.subr.mxu0 0.0
    %252 = vmatpush1.msra.mxu0 %v215
    %253 = vmatprep.subr.mxu0 0.0
    %254 = vmatpush1.msra.mxu0 %v216
    %255 = vmatprep.subr.mxu0 0.0
    %256 = vmatpush1.msra.mxu0 %v217
    %257 = vmatprep.subr.mxu0 0.0
    %258 = vmatpush1.msra.mxu0 0.0
    %259 = vmatprep.subr.mxu0 0.0
    %260 = vmatpush1.msra.mxu0 0.0
    %261 = vmatprep.subr.mxu0 0.0
    %262 = vmatpush1.msra.mxu0 0.0
    %263 = vmatprep.subr.mxu0 0.0
    %264 = vmatpush1.msra.mxu0 0.0
    %265 = vmatprep.subr.mxu0 0.0
    %266 = vmatpush1.msra.mxu0 0.0
    %267 = vmatprep.subr.mxu0 0.0
    %268 = vmatpush1.msra.mxu0 0.0
    %269 = vmatprep.subr.mxu0 0.0
    %270 = vmatpush1.msra.mxu0 0.0
    %271 = vmatprep.subr.mxu0 0.0
    %272 = vmatpush1.msra.mxu0 0.0
    %273 = vmatprep.subr.mxu0 0.0
    %274 = vmatpush1.msra.mxu0 0.0
    %275 = vmatprep.subr.mxu0 0.0
    %276 = vmatpush1.msra.mxu0 0.0
    %277 = vmatprep.subr.mxu0 0.0
    %278 = vmatpush1.msra.mxu0 0.0
    %279 = vmatprep.subr.mxu0 0.0
    %280 = vmatpush1.msra.mxu0 0.0
    %281 = vmatprep.subr.mxu0 0.0
    %282 = vmatpush1.msra.mxu0 0.0
    %283 = vmatprep.subr.mxu0 0.0
    %284 = vmatpush1.msra.mxu0 0.0
    %285 = vmatprep.subr.mxu0 0.0
    %286 = vmatpush1.msra.mxu0 0.0
    %287 = vmatprep.subr.mxu0 0.0
    %288 = vmatpush1.msra.mxu0 0.0
    %289 = vmatprep.mubr.f32.mxu0 0.0
    %290 = vmatmul.mubr.f32.gmra.mrb[0].mxu0 %v198
    %v291 = vpop.f32.mrb[0].mxu0
    %v292 = vadd.f32 %v223, %v291
    %v293 = vpop.f32.mrb[0].mxu0
    %294 = vmatprep.mubr.f32.mxu0 0.0
    %295 = vmatmul.mubr.f32.gmra.mrb[0].mxu0 %v199
    %v296 = vpop.f32.mrb[0].mxu0
    %v297 = vadd.f32 %v223, %v296
    %v298 = vpop.f32.mrb[0].mxu0
    %299 = vmatprep.mubr.f32.mxu0 0.0
    %300 = vmatmul.mubr.f32.gmra.mrb[0].mxu0 %v200
    %v301 = vpop.f32.mrb[0].mxu0
    %v302 = vadd.f32 %v223, %v301
    %v303 = vpop.f32.mrb[0].mxu0
    %304 = vmatprep.mubr.f32.mxu0 0.0
    %305 = vmatmul.mubr.f32.gmra.mrb[0].mxu0 %v201
    %v306 = vpop.f32.mrb[0].mxu0
    %v307 = vadd.f32 %v223, %v306
    %v308 = vpop.f32.mrb[0].mxu0
    %309 = vdwg.mxu0
    %v310 = vmul.f32 %v292, 0.2
    %v311 = vmul.f32 %v297, 0.2
    %v312 = vmul.f32 %v302, 0.2
    %v313 = vmul.f32 %v307, 0.2
    %v314 = vmax.f32 %v292, %v310
    %v315 = vmax.f32 %v297, %v311
    %v316 = vmax.f32 %v302, %v312
    %v317 = vmax.f32 %v307, %v313
    %v318 = vld [vmem:[#allocation8] sm:$0xff]
    %v319 = vld [vmem:[#allocation8 + $0x8] sm:$0xff]
    %v320 = vld [vmem:[#allocation8 + $0x10] sm:$0xff]
    %v321 = vld [vmem:[#allocation8 + $0x18] sm:$0xff]
    %v322 = vld [vmem:[#allocation8 + $0x20] sm:$0xff]
    %v323 = vld [vmem:[#allocation8 + $0x28] sm:$0xff]
    %v324 = vld [vmem:[#allocation8 + $0x30] sm:$0xff]
    %v325 = vld [vmem:[#allocation8 + $0x38] sm:$0xff]
    %v326 = vld [vmem:[#allocation8 + $0x40] sm:$0xff]
    %v327 = vld [vmem:[#allocation8 + $0x48] sm:$0xff]
    %v328 = vld [vmem:[#allocation8 + $0x50] sm:$0xff]
    %v329 = vld [vmem:[#allocation8 + $0x58] sm:$0xff]
    %v330 = vld [vmem:[#allocation8 + $0x60] sm:$0xff]
    %v331 = vld [vmem:[#allocation8 + $0x68] sm:$0xff]
    %v332 = vld [vmem:[#allocation8 + $0x70] sm:$0xff]
    %v333 = vld [vmem:[#allocation8 + $0x78] sm:$0xff]
    %v334 = vld [vmem:[%s6] sm:$0x1]
    %v336 = vlaneseq
    %v337 = vshrl.u32 %v336, 7
    %v338 = vsub.s32 0, %v337
    %v339 = vrot.slane %v334, %v338
    %341 = vmatprep.subr.mxu0 0.0
    %342 = vmatpush1.msra.mxu0 %v318
    %343 = vmatprep.subr.mxu0 0.0
    %344 = vmatpush1.msra.mxu0 %v319
    %345 = vmatprep.subr.mxu0 0.0
    %346 = vmatpush1.msra.mxu0 %v320
    %347 = vmatprep.subr.mxu0 0.0
    %348 = vmatpush1.msra.mxu0 %v321
    %349 = vmatprep.subr.mxu0 0.0
    %350 = vmatpush1.msra.mxu0 %v322
    %351 = vmatprep.subr.mxu0 0.0
    %352 = vmatpush1.msra.mxu0 %v323
    %353 = vmatprep.subr.mxu0 0.0
    %354 = vmatpush1.msra.mxu0 %v324
    %355 = vmatprep.subr.mxu0 0.0
    %356 = vmatpush1.msra.mxu0 %v325
    %357 = vmatprep.subr.mxu0 0.0
    %358 = vmatpush1.msra.mxu0 %v326
    %359 = vmatprep.subr.mxu0 0.0
    %360 = vmatpush1.msra.mxu0 %v327
    %361 = vmatprep.subr.mxu0 0.0
    %362 = vmatpush1.msra.mxu0 %v328
    %363 = vmatprep.subr.mxu0 0.0
    %364 = vmatpush1.msra.mxu0 %v329
    %365 = vmatprep.subr.mxu0 0.0
    %366 = vmatpush1.msra.mxu0 %v330
    %367 = vmatprep.subr.mxu0 0.0
    %368 = vmatpush1.msra.mxu0 %v331
    %369 = vmatprep.subr.mxu0 0.0
    %370 = vmatpush1.msra.mxu0 %v332
    %371 = vmatprep.subr.mxu0 0.0
    %372 = vmatpush1.msra.mxu0 %v333
    %373 = vmatprep.subr.mxu0 0.0
    %374 = vmatpush1.msra.mxu0 0.0
    %375 = vmatprep.subr.mxu0 0.0
    %376 = vmatpush1.msra.mxu0 0.0
    %377 = vmatprep.subr.mxu0 0.0
    %378 = vmatpush1.msra.mxu0 0.0
    %379 = vmatprep.subr.mxu0 0.0
    %380 = vmatpush1.msra.mxu0 0.0
    %381 = vmatprep.subr.mxu0 0.0
    %382 = vmatpush1.msra.mxu0 0.0
    %383 = vmatprep.subr.mxu0 0.0
    %384 = vmatpush1.msra.mxu0 0.0
    %385 = vmatprep.subr.mxu0 0.0
    %386 = vmatpush1.msra.mxu0 0.0
    %387 = vmatprep.subr.mxu0 0.0
    %388 = vmatpush1.msra.mxu0 0.0
    %389 = vmatprep.subr.mxu0 0.0
    %390 = vmatpush1.msra.mxu0 0.0
    %391 = vmatprep.subr.mxu0 0.0
    %392 = vmatpush1.msra.mxu0 0.0
    %393 = vmatprep.subr.mxu0 0.0
    %394 = vmatpush1.msra.mxu0 0.0
    %395 = vmatprep.subr.mxu0 0.0
    %396 = vmatpush1.msra.mxu0 0.0
    %397 = vmatprep.subr.mxu0 0.0
    %398 = vmatpush1.msra.mxu0 0.0
    %399 = vmatprep.subr.mxu0 0.0
    %400 = vmatpush1.msra.mxu0 0.0
    %401 = vmatprep.subr.mxu0 0.0
    %402 = vmatpush1.msra.mxu0 0.0
    %403 = vmatprep.subr.mxu0 0.0
    %404 = vmatpush1.msra.mxu0 0.0
    %405 = vmatprep.mubr.f32.mxu0 0.0
    %406 = vmatmul.mubr.f32.gmra.mrb[0].mxu0 %v314
    %v407 = vpop.f32.mrb[0].mxu0
    %v408 = vadd.f32 %v339, %v407
    %v409 = vpop.f32.mrb[0].mxu0
    %410 = vmatprep.mubr.f32.mxu0 0.0
    %411 = vmatmul.mubr.f32.gmra.mrb[0].mxu0 %v315
    %v412 = vpop.f32.mrb[0].mxu0
    %v413 = vadd.f32 %v339, %v412
    %v414 = vpop.f32.mrb[0].mxu0
    %415 = vmatprep.mubr.f32.mxu0 0.0
    %416 = vmatmul.mubr.f32.gmra.mrb[0].mxu0 %v316
    %v417 = vpop.f32.mrb[0].mxu0
    %v418 = vadd.f32 %v339, %v417
    %v419 = vpop.f32.mrb[0].mxu0
    %420 = vmatprep.mubr.f32.mxu0 0.0
    %421 = vmatmul.mubr.f32.gmra.mrb[0].mxu0 %v317
    %v422 = vpop.f32.mrb[0].mxu0
    %v423 = vadd.f32 %v339, %v422
    %v424 = vpop.f32.mrb[0].mxu0
    %425 = vdwg.mxu0
    %v426 = vtanh.pop %v408
    %v427 = vtanh.pop %v413
    %v428 = vtanh.pop %v418
    %v429 = vtanh.pop %v423
    %430 = vst [vmem:[#allocation10] sm:$0xff] %v426
    %431 = vst [vmem:[#allocation10 + $0x8] sm:$0xff] %v427
    %432 = vst [vmem:[#allocation10 + $0x10] sm:$0xff] %v428
    %433 = vst [vmem:[#allocation10 + $0x18] sm:$0xff] %v429
    // Predicated region
    $region46: #{tpu_custom_call.1} parent=1 // pred_check
      _
    $region47: #{tpu_custom_call.1} parent=1 // pred_check_branch
      %435 = sbr.rel (0) target = $region49
    $region48: #{tpu_custom_call.1} parent=1 // pred_region
      %s437 = ssub.s32 512, 512
      %438 = vsyncadd [#allocation4], %s437
      %s439 = sshll.u32 [#allocation10], 4
      %s440 = int_to_ptr.vmem [resolvable:$true] %s439
      %445 = dma.vmem_to_hbm [thread:$0]  %s440, 512, %s7, [#allocation4], 128, 128, 8
    $region49: #{tpu_custom_call.1} parent=1 // pred_fallthru
      _
    // Predicated region
    $region50: #{tpu_custom_call.1} parent=1 // pred_check
      _
    $region51: #{tpu_custom_call.1} parent=1 // pred_check_branch
      %447 = sbr.rel (0) target = $region53
    $region52: #{tpu_custom_call.1} parent=1 // pred_region
      %448 = dma.done [#allocation4], 512
    $region53: #{tpu_custom_call.1} parent=1 // pred_fallthru
      _
    %449 = vsyncpa [#allocation3], 1
    %450 = vsyncpa [#allocation6], 1
    %451 = vsyncpa [#allocation9], 1
    %452 = vsyncpa [#allocation4], 1

</llo_original>
